<compile_context>
chip_gen: v7x
topology: tpu7x:2x2x1
jax: 0.10.0
libtpu: 0.0.40
codegen_flags: <defaults>
</compile_context>

<pallas_src>
import jax
import jax.numpy as jnp
from jax.experimental import pallas as pl
from jax.experimental.pallas import tpu as pltpu

NUM_CLASSES = 8          # len(emotion_mapping)
_SPLIT_THRESHOLD = 512   # force >= 2 grid tiles above this (v7x: 2 TensorCores/chip)
_MIN_PALLAS_BATCH = 256  # below this, plain XLA wins over any hand kernel


def _cdiv(a, b):
    return -(-a // b)


def _round_up(a, m):
    return _cdiv(a, m) * m


def _mlp_kernel(x_ref, w1_ref, b1_ref, w2_ref, b2_ref, w3_ref, b3_ref,
                w4_ref, b4_ref, o_ref):
    # fc1 + ReLU. x arrives as f32 (no wrapper-side pad/cast pass); cast to bf16
    # here so the MXU sees bf16 inputs while accumulation stays f32.
    x = x_ref[...].astype(jnp.bfloat16)
    h = jnp.dot(x, w1_ref[...], preferred_element_type=jnp.float32)
    h = jnp.maximum(h + b1_ref[...], 0.0)
    # dropout(0.3) -> identity in eval mode
    # TODO(synk): training-mode dropout (pltpu.prng_random_bits mask) not emitted; eval semantics only.
    # fc2 + ReLU
    h = jnp.dot(h.astype(jnp.bfloat16), w2_ref[...],
                preferred_element_type=jnp.float32)
    h = jnp.maximum(h + b2_ref[...], 0.0)
    # fc3 + ReLU
    h = jnp.dot(h.astype(jnp.bfloat16), w3_ref[...],
                preferred_element_type=jnp.float32)
    h = jnp.maximum(h + b3_ref[...], 0.0)
    # fc4 (logits, no activation)
    out = jnp.dot(h.astype(jnp.bfloat16), w4_ref[...],
                  preferred_element_type=jnp.float32)
    o_ref[...] = (out + b4_ref[...]).astype(o_ref.dtype)


def _compute_tiling(B, block_m):
    """Balanced batch tiles: choose tile count first, then balance tile size."""
    num_tiles = _cdiv(B, block_m)
    if B >= _SPLIT_THRESHOLD:
        num_tiles = max(num_tiles, 2)      # keep both v7x TensorCores busy
    tm = _round_up(_cdiv(B, num_tiles), 8)  # sublane-aligned
    num_tiles = _cdiv(B, tm)
    return tm, num_tiles, tm * num_tiles


def _xla_forward(x, params):
    """Fused XLA path for tiny batches. Same precision contract as the kernel
    (bf16 MXU inputs, f32 accumulation / elementwise)."""
    h = x
    for name in ("fc1", "fc2", "fc3"):
        w, b = params[name]
        h = jnp.dot(h.astype(jnp.bfloat16), w.astype(jnp.bfloat16),
                    preferred_element_type=jnp.float32)
        h = jnp.maximum(h + b, 0.0)
    w, b = params["fc4"]
    return jnp.dot(h.astype(jnp.bfloat16), w.astype(jnp.bfloat16),
                   preferred_element_type=jnp.float32) + b


def mood_classifier_forward(x, params, *, block_m=2048, force_pallas=False):
    """x: [B, input_size] float32. params: dict name -> (w [in, out] f32, b [1, out] f32)."""
    B, in_dim = x.shape
    w1, b1 = params["fc1"]
    w2, b2 = params["fc2"]
    w3, b3 = params["fc3"]
    w4, b4 = params["fc4"]
    assert w1.shape[0] == in_dim

    # Tiny batches: the XLA dot chain beats pallas_call launch + pipeline overhead.
    if not force_pallas and B < _MIN_PALLAS_BATCH:
        return _xla_forward(x, params)

    tm, num_tiles, b_pad = _compute_tiling(B, block_m)

    # Only the (partial-tile) batch pad remains; no feature pad, no wrapper cast of x.
    xp = x if b_pad == B else jnp.pad(x, ((0, b_pad - B), (0, 0)))

    # Weights are tiny (~54 KB total) — cast once at the call boundary.
    w1b, w2b, w3b, w4b = (w.astype(jnp.bfloat16) for w in (w1, w2, w3, w4))

    def pinned(shape):
        # Full-array block, same block index for every grid step -> DMA'd once,
        # stays VMEM-resident across the whole grid.
        return pl.BlockSpec(shape, lambda i: (0, 0))

    in_specs = [
        pl.BlockSpec((tm, in_dim), lambda i: (i, 0)),   # x streams over batch tiles
        pinned(w1b.shape), pinned(b1.shape),
        pinned(w2b.shape), pinned(b2.shape),
        pinned(w3b.shape), pinned(b3.shape),
        pinned(w4b.shape), pinned(b4.shape),
    ]
    out_spec = pl.BlockSpec((tm, NUM_CLASSES), lambda i: (i, 0))

    flops = 2 * b_pad * (in_dim * 128 + 128 * 64 + 64 * 32 + 32 * NUM_CLASSES)
    weight_bytes = sum(int(a.size) * a.dtype.itemsize
                       for a in (w1b, w2b, w3b, w4b, b1, b2, b3, b4))
    bytes_accessed = int(xp.size) * 4 + b_pad * NUM_CLASSES * 4 + weight_bytes

    out = pl.pallas_call(
        _mlp_kernel,
        out_shape=jax.ShapeDtypeStruct((b_pad, NUM_CLASSES), jnp.float32),
        grid=(num_tiles,),
        in_specs=in_specs,
        out_specs=out_spec,
        compiler_params=pltpu.CompilerParams(
            dimension_semantics=("parallel",),          # megacore sharding on v7x
            vmem_limit_bytes=32 * 1024 * 1024,          # >= v5e's 16 MiB default; fits v7x's 64 MiB
        ),
        cost_estimate=pl.CostEstimate(
            flops=flops, transcendentals=0, bytes_accessed=bytes_accessed),
    )(xp, w1b, b1, w2b, b2, w3b, b3, w4b, b4)

    # Padded rows carry garbage logits (bias through ReLU) — always slice them off.
    return out[:B]


def init_params(key, input_size):
    """PyTorch nn.Linear-style init: U(-1/sqrt(fan_in), 1/sqrt(fan_in)).
    Weights stored as [in, out] (already transposed for x @ W)."""
    dims = [(input_size, 128), (128, 64), (64, 32), (32, NUM_CLASSES)]
    names = ["fc1", "fc2", "fc3", "fc4"]
    params = {}
    for name, (fan_in, fan_out) in zip(names, dims):
        key, kw, kb = jax.random.split(key, 3)
        bound = 1.0 / jnp.sqrt(jnp.float32(fan_in))
        w = jax.random.uniform(kw, (fan_in, fan_out), jnp.float32, -bound, bound)
        b = jax.random.uniform(kb, (1, fan_out), jnp.float32, -bound, bound)
        params[name] = (w, b)
    return params


def reference_forward(x, params):
    """Mirrors the kernel numerics: bf16 matmul inputs, f32 accumulation / elementwise.
    (Documented precision contract: this deviates from a pure-f32 PyTorch forward by
    bf16 matmul-input rounding.)"""
    return _xla_forward(x, params)


if __name__ == "__main__":
    # Shapes consistent with the module: max_length = 8 MFCC frames -> input_size = 8 * 13 = 104.
    max_length = 8
    input_size = max_length * 13  # 104

    key = jax.random.PRNGKey(0)
    key, kx = jax.random.split(key)
    params = init_params(key, input_size)

    # 1) Small batch (batch=2): force the Pallas path to validate the kernel itself
    #    (the dispatcher would normally route this to the fused XLA path).
    x_small = jax.random.normal(kx, (2, input_size), jnp.float32)
    out_small = jax.block_until_ready(
        mood_classifier_forward(x_small, params, force_pallas=True))
    ref_small = reference_forward(x_small, params)
    assert out_small.shape == (2, NUM_CLASSES), out_small.shape
    assert jnp.allclose(out_small, ref_small, atol=2e-3, rtol=2e-3), (
        f"max abs err {jnp.max(jnp.abs(out_small - ref_small))}")

    # 2) Larger batch (1000 rows): exercises balanced tiling, partial-tile batch
    #    padding, and the >=2 parallel tiles used for v7x megacore sharding.
    key, kx2 = jax.random.split(key)
    x_big = jax.random.normal(kx2, (1000, input_size), jnp.float32)
    out_big = jax.block_until_ready(mood_classifier_forward(x_big, params))
    ref_big = reference_forward(x_big, params)
    assert out_big.shape == (1000, NUM_CLASSES), out_big.shape
    assert jnp.allclose(out_big, ref_big, atol=2e-3, rtol=2e-3), (
        f"max abs err {jnp.max(jnp.abs(out_big - ref_big))}")

    print("KERNEL_OK")
</pallas_src>

<mosaic_0001>
module attributes {stable_mosaic.version = 11 : i64} {
  func.func @_mlp_kernel(%arg0: i32, %arg1: memref<8x104xf32, #tpu.memory_space<vmem>>, %arg2: memref<104x128xbf16, #tpu.memory_space<vmem>>, %arg3: memref<1x128xf32, #tpu.memory_space<vmem>>, %arg4: memref<128x64xbf16, #tpu.memory_space<vmem>>, %arg5: memref<1x64xf32, #tpu.memory_space<vmem>>, %arg6: memref<64x32xbf16, #tpu.memory_space<vmem>>, %arg7: memref<1x32xf32, #tpu.memory_space<vmem>>, %arg8: memref<32x8xbf16, #tpu.memory_space<vmem>>, %arg9: memref<1x8xf32, #tpu.memory_space<vmem>>, %arg10: memref<8x8xf32, #tpu.memory_space<vmem>>) attributes {dimension_semantics = [#tpu.dimension_semantics<parallel>], iteration_bounds = array<i64: 1>, scalar_prefetch = 0 : i64, scratch_operands = 0 : i64, tpu.core_type = #tpu.core_type<tc>, window_params = [{transform_indices = @transform_0, window_bounds = array<i64: 8, 104>}, {pipeline_mode = #tpu.pipeline_mode<synchronous>, transform_indices = @transform_1, window_bounds = array<i64: 104, 128>}, {pipeline_mode = #tpu.pipeline_mode<synchronous>, transform_indices = @transform_2, window_bounds = array<i64: 1, 128>}, {pipeline_mode = #tpu.pipeline_mode<synchronous>, transform_indices = @transform_3, window_bounds = array<i64: 128, 64>}, {pipeline_mode = #tpu.pipeline_mode<synchronous>, transform_indices = @transform_4, window_bounds = array<i64: 1, 64>}, {pipeline_mode = #tpu.pipeline_mode<synchronous>, transform_indices = @transform_5, window_bounds = array<i64: 64, 32>}, {pipeline_mode = #tpu.pipeline_mode<synchronous>, transform_indices = @transform_6, window_bounds = array<i64: 1, 32>}, {pipeline_mode = #tpu.pipeline_mode<synchronous>, transform_indices = @transform_7, window_bounds = array<i64: 32, 8>}, {pipeline_mode = #tpu.pipeline_mode<synchronous>, transform_indices = @transform_8, window_bounds = array<i64: 1, 8>}, {transform_indices = @transform_9, window_bounds = array<i64: 8, 8>}]} {
    %c0 = arith.constant 0 : index
    %c0_0 = arith.constant 0 : index
    %0 = vector.load %arg1[%c0, %c0_0] : memref<8x104xf32, #tpu.memory_space<vmem>>, vector<8x104xf32>
    %1 = arith.truncf %0 : vector<8x104xf32> to vector<8x104xbf16>
    %c0_1 = arith.constant 0 : index
    %c0_2 = arith.constant 0 : index
    %2 = vector.load %arg2[%c0_1, %c0_2] : memref<104x128xbf16, #tpu.memory_space<vmem>>, vector<104x128xbf16>
    %cst = arith.constant dense<0.000000e+00> : vector<8x128xf32>
    %3 = tpu.matmul %1, %2, %cst {dimension_numbers = #tpu.dot_dimension_numbers<[1], [0], [0], [1], [0, 0, 1, 1], [], []>} : vector<8x104xbf16>, vector<104x128xbf16>, vector<8x128xf32> -> vector<8x128xf32>
    %c0_3 = arith.constant 0 : index
    %c0_4 = arith.constant 0 : index
    %4 = vector.load %arg3[%c0_3, %c0_4] : memref<1x128xf32, #tpu.memory_space<vmem>>, vector<1x128xf32>
    %5 = vector.broadcast %4 : vector<1x128xf32> to vector<8x128xf32>
    %6 = arith.addf %3, %5 : vector<8x128xf32>
    %cst_5 = arith.constant 0.000000e+00 : f32
    %7 = vector.broadcast %cst_5 : f32 to vector<8x128xf32>
    %8 = arith.maximumf %6, %7 : vector<8x128xf32>
    %9 = arith.truncf %8 : vector<8x128xf32> to vector<8x128xbf16>
    %c0_6 = arith.constant 0 : index
    %c0_7 = arith.constant 0 : index
    %10 = vector.load %arg4[%c0_6, %c0_7] : memref<128x64xbf16, #tpu.memory_space<vmem>>, vector<128x64xbf16>
    %cst_8 = arith.constant dense<0.000000e+00> : vector<8x64xf32>
    %11 = tpu.matmul %9, %10, %cst_8 {dimension_numbers = #tpu.dot_dimension_numbers<[1], [0], [0], [1], [0, 0, 1, 1], [], []>} : vector<8x128xbf16>, vector<128x64xbf16>, vector<8x64xf32> -> vector<8x64xf32>
    %c0_9 = arith.constant 0 : index
    %c0_10 = arith.constant 0 : index
    %12 = vector.load %arg5[%c0_9, %c0_10] : memref<1x64xf32, #tpu.memory_space<vmem>>, vector<1x64xf32>
    %13 = vector.broadcast %12 : vector<1x64xf32> to vector<8x64xf32>
    %14 = arith.addf %11, %13 : vector<8x64xf32>
    %cst_11 = arith.constant 0.000000e+00 : f32
    %15 = vector.broadcast %cst_11 : f32 to vector<8x64xf32>
    %16 = arith.maximumf %14, %15 : vector<8x64xf32>
    %17 = arith.truncf %16 : vector<8x64xf32> to vector<8x64xbf16>
    %c0_12 = arith.constant 0 : index
    %c0_13 = arith.constant 0 : index
    %18 = vector.load %arg6[%c0_12, %c0_13] : memref<64x32xbf16, #tpu.memory_space<vmem>>, vector<64x32xbf16>
    %cst_14 = arith.constant dense<0.000000e+00> : vector<8x32xf32>
    %19 = tpu.matmul %17, %18, %cst_14 {dimension_numbers = #tpu.dot_dimension_numbers<[1], [0], [0], [1], [0, 0, 1, 1], [], []>} : vector<8x64xbf16>, vector<64x32xbf16>, vector<8x32xf32> -> vector<8x32xf32>
    %c0_15 = arith.constant 0 : index
    %c0_16 = arith.constant 0 : index
    %20 = vector.load %arg7[%c0_15, %c0_16] : memref<1x32xf32, #tpu.memory_space<vmem>>, vector<1x32xf32>
    %21 = vector.broadcast %20 : vector<1x32xf32> to vector<8x32xf32>
    %22 = arith.addf %19, %21 : vector<8x32xf32>
    %cst_17 = arith.constant 0.000000e+00 : f32
    %23 = vector.broadcast %cst_17 : f32 to vector<8x32xf32>
    %24 = arith.maximumf %22, %23 : vector<8x32xf32>
    %25 = arith.truncf %24 : vector<8x32xf32> to vector<8x32xbf16>
    %c0_18 = arith.constant 0 : index
    %c0_19 = arith.constant 0 : index
    %26 = vector.load %arg8[%c0_18, %c0_19] : memref<32x8xbf16, #tpu.memory_space<vmem>>, vector<32x8xbf16>
    %cst_20 = arith.constant dense<0.000000e+00> : vector<8x8xf32>
    %27 = tpu.matmul %25, %26, %cst_20 {dimension_numbers = #tpu.dot_dimension_numbers<[1], [0], [0], [1], [0, 0, 1, 1], [], []>} : vector<8x32xbf16>, vector<32x8xbf16>, vector<8x8xf32> -> vector<8x8xf32>
    %c0_21 = arith.constant 0 : index
    %c0_22 = arith.constant 0 : index
    %28 = vector.load %arg9[%c0_21, %c0_22] : memref<1x8xf32, #tpu.memory_space<vmem>>, vector<1x8xf32>
    %29 = vector.broadcast %28 : vector<1x8xf32> to vector<8x8xf32>
    %30 = arith.addf %27, %29 : vector<8x8xf32>
    %c0_23 = arith.constant 0 : index
    %c0_24 = arith.constant 0 : index
    %31 = vector.load %arg10[%c0_23, %c0_24] : memref<8x8xf32, #tpu.memory_space<vmem>>, vector<8x8xf32>
    tpu.vector_store %arg10[%c0_23, %c0_24], %30 {strides = array<i32>} : memref<8x8xf32, #tpu.memory_space<vmem>>, vector<8x8xf32>,
    return
  }
  func.func @transform_0(%arg0: i32) -> (i32, i32) {
    %c0_i32 = arith.constant 0 : i32
    %c0_i32_0 = arith.constant 0 : i32
    return %arg0, %c0_i32 : i32, i32
  }
  func.func @transform_1(%arg0: i32) -> (i32, i32) {
    %c0_i32 = arith.constant 0 : i32
    %c0_i32_0 = arith.constant 0 : i32
    %c0_i32_1 = arith.constant 0 : i32
    return %c0_i32, %c0_i32_0 : i32, i32
  }
  func.func @transform_2(%arg0: i32) -> (i32, i32) {
    %c0_i32 = arith.constant 0 : i32
    %c0_i32_0 = arith.constant 0 : i32
    %c0_i32_1 = arith.constant 0 : i32
    return %c0_i32, %c0_i32_0 : i32, i32
  }
  func.func @transform_3(%arg0: i32) -> (i32, i32) {
    %c0_i32 = arith.constant 0 : i32
    %c0_i32_0 = arith.constant 0 : i32
    %c0_i32_1 = arith.constant 0 : i32
    return %c0_i32, %c0_i32_0 : i32, i32
  }
  func.func @transform_4(%arg0: i32) -> (i32, i32) {
    %c0_i32 = arith.constant 0 : i32
    %c0_i32_0 = arith.constant 0 : i32
    %c0_i32_1 = arith.constant 0 : i32
    return %c0_i32, %c0_i32_0 : i32, i32
  }
  func.func @transform_5(%arg0: i32) -> (i32, i32) {
    %c0_i32 = arith.constant 0 : i32
    %c0_i32_0 = arith.constant 0 : i32
    %c0_i32_1 = arith.constant 0 : i32
    return %c0_i32, %c0_i32_0 : i32, i32
  }
  func.func @transform_6(%arg0: i32) -> (i32, i32) {
    %c0_i32 = arith.constant 0 : i32
    %c0_i32_0 = arith.constant 0 : i32
    %c0_i32_1 = arith.constant 0 : i32
    return %c0_i32, %c0_i32_0 : i32, i32
  }
  func.func @transform_7(%arg0: i32) -> (i32, i32) {
    %c0_i32 = arith.constant 0 : i32
    %c0_i32_0 = arith.constant 0 : i32
    %c0_i32_1 = arith.constant 0 : i32
    return %c0_i32, %c0_i32_0 : i32, i32
  }
  func.func @transform_8(%arg0: i32) -> (i32, i32) {
    %c0_i32 = arith.constant 0 : i32
    %c0_i32_0 = arith.constant 0 : i32
    %c0_i32_1 = arith.constant 0 : i32
    return %c0_i32, %c0_i32_0 : i32, i32
  }
  func.func @transform_9(%arg0: i32) -> (i32, i32) {
    %c0_i32 = arith.constant 0 : i32
    %c0_i32_0 = arith.constant 0 : i32
    return %arg0, %c0_i32 : i32, i32
  }
}

</mosaic_0001>

<llo_original>
// kernel: tpu_custom_call.1
$region0: #{tpu_custom_call.1}
  #allocation0 [shape = 'u32[]', space=smem, size = 0x4, offset = 0x4, fixed_abs, tag = 'smem constant byte address 0x4 - core index']
  #allocation1 [shape = 'u32[144,128]{1,0:T(1,128)}', space=vmem, size = 0x12000, scoped, tag = 'internal scratch']
  %s0 = inlined_call_operand.vmem [shape: f32[8,104], index: 0, kind: input, shape index: {}]
  %s1 = inlined_call_operand.vmem [shape: bf16[104,128], index: 1, kind: input, shape index: {}]
  %s2 = inlined_call_operand.vmem [shape: f32[1,128], index: 2, kind: input, shape index: {}]
  %s3 = inlined_call_operand.vmem [shape: bf16[128,64], index: 3, kind: input, shape index: {}]
  %s4 = inlined_call_operand.vmem [shape: f32[1,64], index: 4, kind: input, shape index: {}]
  %s5 = inlined_call_operand.vmem [shape: bf16[64,32], index: 5, kind: input, shape index: {}]
  %s6 = inlined_call_operand.vmem [shape: f32[1,32], index: 6, kind: input, shape index: {}]
  %s7 = inlined_call_operand.vmem [shape: bf16[32,8], index: 7, kind: input, shape index: {}]
  %s8 = inlined_call_operand.vmem [shape: f32[1,8], index: 8, kind: input, shape index: {}]
  %s9 = inlined_call_operand.hbm [shape: f32[8,8], index: 9, kind: output, shape index: {}]
  %s10 = sld [smem:[#allocation0]]
  $region46: #{tpu_custom_call.1} parent=0
    _
  %s12 = ssub.s32 1, %s10
  %s13 = scalar_select 0, %s12, %s10
  $region1: #{tpu_custom_call.1} parent=0
    #allocation2 [shape = 'u8[4096]{0}', space=vmem, size = 0x1000, scoped, tag = 'output window, operand 0, single buffered']
    #allocation3 [shape = 's32[1]{0}', space=sflag, size = 0x4, scoped, tag = 'scoped memory for tpu_custom_call.1']
    %14 = vsyncpa [#allocation3], 0
    // Predicated region
    $region2: #{tpu_custom_call.1} parent=1 // pred_check
      _
    $region3: #{tpu_custom_call.1} parent=1 // pred_check_branch
      %16 = sbr.rel (0) target = $region5
    $region4: #{tpu_custom_call.1} parent=1 // pred_region
      _
    $region5: #{tpu_custom_call.1} parent=1 // pred_fallthru
      _
    // Predicated region
    $region6: #{tpu_custom_call.1} parent=1 // pred_check
      _
    $region7: #{tpu_custom_call.1} parent=1 // pred_check_branch
      %18 = sbr.rel (0) target = $region9
    $region8: #{tpu_custom_call.1} parent=1 // pred_region
      _
    $region9: #{tpu_custom_call.1} parent=1 // pred_fallthru
      _
    // Predicated region
    $region10: #{tpu_custom_call.1} parent=1 // pred_check
      _
    $region11: #{tpu_custom_call.1} parent=1 // pred_check_branch
      %20 = sbr.rel (0) target = $region13
    $region12: #{tpu_custom_call.1} parent=1 // pred_region
      _
    $region13: #{tpu_custom_call.1} parent=1 // pred_fallthru
      _
    // Predicated region
    $region14: #{tpu_custom_call.1} parent=1 // pred_check
      _
    $region15: #{tpu_custom_call.1} parent=1 // pred_check_branch
      %22 = sbr.rel (0) target = $region17
    $region16: #{tpu_custom_call.1} parent=1 // pred_region
      _
    $region17: #{tpu_custom_call.1} parent=1 // pred_fallthru
      _
    // Predicated region
    $region18: #{tpu_custom_call.1} parent=1 // pred_check
      _
    $region19: #{tpu_custom_call.1} parent=1 // pred_check_branch
      %24 = sbr.rel (0) target = $region21
    $region20: #{tpu_custom_call.1} parent=1 // pred_region
      _
    $region21: #{tpu_custom_call.1} parent=1 // pred_fallthru
      _
    // Predicated region
    $region22: #{tpu_custom_call.1} parent=1 // pred_check
      _
    $region23: #{tpu_custom_call.1} parent=1 // pred_check_branch
      %26 = sbr.rel (0) target = $region25
    $region24: #{tpu_custom_call.1} parent=1 // pred_region
      _
    $region25: #{tpu_custom_call.1} parent=1 // pred_fallthru
      _
    // Predicated region
    $region26: #{tpu_custom_call.1} parent=1 // pred_check
      _
    $region27: #{tpu_custom_call.1} parent=1 // pred_check_branch
      %28 = sbr.rel (0) target = $region29
    $region28: #{tpu_custom_call.1} parent=1 // pred_region
      _
    $region29: #{tpu_custom_call.1} parent=1 // pred_fallthru
      _
    // Predicated region
    $region30: #{tpu_custom_call.1} parent=1 // pred_check
      _
    $region31: #{tpu_custom_call.1} parent=1 // pred_check_branch
      %30 = sbr.rel (0) target = $region33
    $region32: #{tpu_custom_call.1} parent=1 // pred_region
      _
    $region33: #{tpu_custom_call.1} parent=1 // pred_fallthru
      _
    // Predicated region
    $region34: #{tpu_custom_call.1} parent=1 // pred_check
      _
    $region35: #{tpu_custom_call.1} parent=1 // pred_check_branch
      %32 = sbr.rel (0) target = $region37
    $region36: #{tpu_custom_call.1} parent=1 // pred_region
      _
    $region37: #{tpu_custom_call.1} parent=1 // pred_fallthru
      _
    %v34 = vld [vmem:[%s0] sm:$0xff]
    %v35 = vpack.c.bf16 %v34, %v34
    %v36 = vld [vmem:[%s1] sm:$0xf]
    %v37 = vld [vmem:[%s1 + $0x4] sm:$0xf]
    %v38 = vld [vmem:[%s1 + $0x8] sm:$0xf]
    %v39 = vld [vmem:[%s1 + $0xc] sm:$0xf]
    %v40 = vld [vmem:[%s1 + $0x10] sm:$0xf]
    %v41 = vld [vmem:[%s1 + $0x14] sm:$0xf]
    %v42 = vld [vmem:[%s1 + $0x18] sm:$0xf]
    %v43 = vld [vmem:[%s1 + $0x1c] sm:$0xf]
    %v44 = vld [vmem:[%s1 + $0x20] sm:$0xf]
    %v45 = vld [vmem:[%s1 + $0x24] sm:$0xf]
    %v46 = vld [vmem:[%s1 + $0x28] sm:$0xf]
    %v47 = vld [vmem:[%s1 + $0x2c] sm:$0xf]
    %v48 = vld [vmem:[%s1 + $0x30] sm:$0xf]
    %v49 = vld [vmem:[%s2] sm:$0x1]
    %v51 = vlaneseq
    %v52 = vshrl.u32 %v51, 7
    %v53 = vsub.s32 0, %v52
    %v54 = vrot.slane %v49, %v53
    %v69 = vunpack.c.l.b16 %v36
    %v70 = vunpack.c.l.b16 %v37
    %v71 = vunpack.c.l.b16 %v38
    %v72 = vunpack.c.l.b16 %v39
    %v73 = vunpack.c.l.b16 %v40
    %v74 = vunpack.c.l.b16 %v41
    %v75 = vunpack.c.l.b16 %v42
    %v76 = vunpack.c.l.b16 %v43
    %v77 = vunpack.c.l.b16 %v44
    %v78 = vunpack.c.l.b16 %v45
    %v79 = vunpack.c.l.b16 %v46
    %v80 = vunpack.c.l.b16 %v47
    %v81 = vunpack.c.l.b16 %v48
    %v82 = vpack.c.b16 %v70, %v69
    %v83 = vpack.c.b16 %v72, %v71
    %v84 = vpack.c.b16 %v74, %v73
    %v85 = vpack.c.b16 %v76, %v75
    %v86 = vpack.c.b16 %v78, %v77
    %v87 = vpack.c.b16 %v80, %v79
    %v88 = vpack.c.b16 %v81, %v81
    %vm95 = vcmask 850944
    %v97 = vsel %vm95, %v35, 0
    %vm99 = vcmask 1043456
    %v101 = vsel %vm99, %v88, 0
    %103 = vmatprep.subr.bf16.mxu0 0
    %104 = vmatpush1.bf16.msra.mxu0 %v82
    %105 = vmatprep.subr.bf16.mxu0 0
    %106 = vmatpush1.bf16.msra.mxu0 %v83
    %107 = vmatprep.subr.bf16.mxu0 0
    %108 = vmatpush1.bf16.msra.mxu0 %v84
    %109 = vmatprep.subr.bf16.mxu0 0
    %110 = vmatpush1.bf16.msra.mxu0 %v85
    %111 = vmatprep.subr.bf16.mxu0 0
    %112 = vmatpush1.bf16.msra.mxu0 %v86
    %113 = vmatprep.subr.bf16.mxu0 0
    %114 = vmatpush1.bf16.msra.mxu0 %v87
    %115 = vmatprep.subr.bf16.mxu0 0
    %116 = vmatpush1.bf16.msra.mxu0 %v101
    %117 = vmatprep.subr.bf16.mxu0 0
    %118 = vmatpush1.bf16.msra.mxu0 0
    %119 = vmatprep.subr.bf16.mxu0 0
    %120 = vmatpush1.bf16.msra.mxu0 0
    %121 = vmatprep.subr.bf16.mxu0 0
    %122 = vmatpush1.bf16.msra.mxu0 0
    %123 = vmatprep.subr.bf16.mxu0 0
    %124 = vmatpush1.bf16.msra.mxu0 0
    %125 = vmatprep.subr.bf16.mxu0 0
    %126 = vmatpush1.bf16.msra.mxu0 0
    %127 = vmatprep.subr.bf16.mxu0 0
    %128 = vmatpush1.bf16.msra.mxu0 0
    %129 = vmatprep.subr.bf16.mxu0 0
    %130 = vmatpush1.bf16.msra.mxu0 0
    %131 = vmatprep.subr.bf16.mxu0 0
    %132 = vmatpush1.bf16.msra.mxu0 0
    %133 = vmatprep.subr.bf16.mxu0 0
    %134 = vmatpush1.bf16.msra.mxu0 0
    %135 = vmatprep.mubr.bf16.mxu0 0
    %136 = vmatmul.mubr.bf16.gmra.mrb[0].mxu0 %v97
    %v137 = vpop.f32.mrb[0].mxu0
    %v138 = vadd.f32 %v54, %v137
    %v139 = vpop.f32.mrb[0].mxu0
    %v140 = vpop.f32.mrb[0].mxu0
    %v141 = vpop.f32.mrb[0].mxu0
    %142 = vdwg.mxu0
    %v143 = vmax.f32 %v138, 0.0
    %v144 = vpack.c.bf16 %v143, %v143
    %v145 = vld [vmem:[%s3] sm:$0xf]
    %v146 = vld [vmem:[%s3 + $0x4] sm:$0xf]
    %v147 = vld [vmem:[%s3 + $0x8] sm:$0xf]
    %v148 = vld [vmem:[%s3 + $0xc] sm:$0xf]
    %v149 = vld [vmem:[%s3 + $0x10] sm:$0xf]
    %v150 = vld [vmem:[%s3 + $0x14] sm:$0xf]
    %v151 = vld [vmem:[%s3 + $0x18] sm:$0xf]
    %v152 = vld [vmem:[%s3 + $0x1c] sm:$0xf]
    %v153 = vld [vmem:[%s3 + $0x20] sm:$0xf]
    %v154 = vld [vmem:[%s3 + $0x24] sm:$0xf]
    %v155 = vld [vmem:[%s3 + $0x28] sm:$0xf]
    %v156 = vld [vmem:[%s3 + $0x2c] sm:$0xf]
    %v157 = vld [vmem:[%s3 + $0x30] sm:$0xf]
    %v158 = vld [vmem:[%s3 + $0x34] sm:$0xf]
    %v159 = vld [vmem:[%s3 + $0x38] sm:$0xf]
    %v160 = vld [vmem:[%s3 + $0x3c] sm:$0xf]
    %v161 = vld [vmem:[%s4] sm:$0x1]
    %v163 = vlaneseq
    %v164 = vshrl.u32 %v163, 7
    %v165 = vsub.s32 0, %v164
    %v166 = vrot.slane %v161, %v165
    %v184 = vunpack.c.l.b16 %v145
    %v185 = vunpack.c.l.b16 %v146
    %v186 = vunpack.c.l.b16 %v147
    %v187 = vunpack.c.l.b16 %v148
    %v188 = vunpack.c.l.b16 %v149
    %v189 = vunpack.c.l.b16 %v150
    %v190 = vunpack.c.l.b16 %v151
    %v191 = vunpack.c.l.b16 %v152
    %v192 = vunpack.c.l.b16 %v153
    %v193 = vunpack.c.l.b16 %v154
    %v194 = vunpack.c.l.b16 %v155
    %v195 = vunpack.c.l.b16 %v156
    %v196 = vunpack.c.l.b16 %v157
    %v197 = vunpack.c.l.b16 %v158
    %v198 = vunpack.c.l.b16 %v159
    %v199 = vunpack.c.l.b16 %v160
    %v200 = vpack.c.b16 %v185, %v184
    %v201 = vpack.c.b16 %v187, %v186
    %v202 = vpack.c.b16 %v189, %v188
    %v203 = vpack.c.b16 %v191, %v190
    %v204 = vpack.c.b16 %v193, %v192
    %v205 = vpack.c.b16 %v195, %v194
    %v206 = vpack.c.b16 %v197, %v196
    %v207 = vpack.c.b16 %v199, %v198
    %216 = vmatprep.subr.bf16.mxu0 0
    %217 = vmatpush1.bf16.msra.mxu0 %v200
    %218 = vmatprep.subr.bf16.mxu0 0
    %219 = vmatpush1.bf16.msra.mxu0 %v201
    %220 = vmatprep.subr.bf16.mxu0 0
    %221 = vmatpush1.bf16.msra.mxu0 %v202
    %222 = vmatprep.subr.bf16.mxu0 0
    %223 = vmatpush1.bf16.msra.mxu0 %v203
    %224 = vmatprep.subr.bf16.mxu0 0
    %225 = vmatpush1.bf16.msra.mxu0 %v204
    %226 = vmatprep.subr.bf16.mxu0 0
    %227 = vmatpush1.bf16.msra.mxu0 %v205
    %228 = vmatprep.subr.bf16.mxu0 0
    %229 = vmatpush1.bf16.msra.mxu0 %v206
    %230 = vmatprep.subr.bf16.mxu0 0
    %231 = vmatpush1.bf16.msra.mxu0 %v207
    %232 = vmatprep.subr.bf16.mxu0 0
    %233 = vmatpush1.bf16.msra.mxu0 0
    %234 = vmatprep.subr.bf16.mxu0 0
    %235 = vmatpush1.bf16.msra.mxu0 0
    %236 = vmatprep.subr.bf16.mxu0 0
    %237 = vmatpush1.bf16.msra.mxu0 0
    %238 = vmatprep.subr.bf16.mxu0 0
    %239 = vmatpush1.bf16.msra.mxu0 0
    %240 = vmatprep.subr.bf16.mxu0 0
    %241 = vmatpush1.bf16.msra.mxu0 0
    %242 = vmatprep.subr.bf16.mxu0 0
    %243 = vmatpush1.bf16.msra.mxu0 0
    %244 = vmatprep.subr.bf16.mxu0 0
    %245 = vmatpush1.bf16.msra.mxu0 0
    %246 = vmatprep.subr.bf16.mxu0 0
    %247 = vmatpush1.bf16.msra.mxu0 0
    %248 = vmatprep.mubr.bf16.mxu0 0
    %249 = vmatmul.mubr.bf16.gmra.mrb[0].mxu0 %v144
    %v250 = vpop.f32.mrb[0].mxu0
    %v251 = vadd.f32 %v166, %v250
    %v252 = vpop.f32.mrb[0].mxu0
    %v253 = vpop.f32.mrb[0].mxu0
    %v254 = vpop.f32.mrb[0].mxu0
    %255 = vdwg.mxu0
    %v256 = vmax.f32 %v251, 0.0
    %v257 = vpack.c.bf16 %v256, %v256
    %v258 = vld [vmem:[%s5] sm:$0xf]
    %v259 = vld [vmem:[%s5 + $0x4] sm:$0xf]
    %v260 = vld [vmem:[%s5 + $0x8] sm:$0xf]
    %v261 = vld [vmem:[%s5 + $0xc] sm:$0xf]
    %v262 = vld [vmem:[%s5 + $0x10] sm:$0xf]
    %v263 = vld [vmem:[%s5 + $0x14] sm:$0xf]
    %v264 = vld [vmem:[%s5 + $0x18] sm:$0xf]
    %v265 = vld [vmem:[%s5 + $0x1c] sm:$0xf]
    %v266 = vld [vmem:[%s6] sm:$0x1]
    %v268 = vlaneseq
    %v269 = vshrl.u32 %v268, 7
    %v270 = vsub.s32 0, %v269
    %v271 = vrot.slane %v266, %v270
    %v281 = vunpack.c.l.b16 %v258
    %v282 = vunpack.c.l.b16 %v259
    %v283 = vunpack.c.l.b16 %v260
    %v284 = vunpack.c.l.b16 %v261
    %v285 = vunpack.c.l.b16 %v262
    %v286 = vunpack.c.l.b16 %v263
    %v287 = vunpack.c.l.b16 %v264
    %v288 = vunpack.c.l.b16 %v265
    %v289 = vpack.c.b16 %v282, %v281
    %v290 = vpack.c.b16 %v284, %v283
    %v291 = vpack.c.b16 %v286, %v285
    %v292 = vpack.c.b16 %v288, %v287
    %vm297 = vcmask 523264
    %v299 = vsel %vm297, %v257, 0
    %301 = vmatprep.subr.bf16.mxu0 0
    %302 = vmatpush1.bf16.msra.mxu0 %v289
    %303 = vmatprep.subr.bf16.mxu0 0
    %304 = vmatpush1.bf16.msra.mxu0 %v290
    %305 = vmatprep.subr.bf16.mxu0 0
    %306 = vmatpush1.bf16.msra.mxu0 %v291
    %307 = vmatprep.subr.bf16.mxu0 0
    %308 = vmatpush1.bf16.msra.mxu0 %v292
    %309 = vmatprep.subr.bf16.mxu0 0
    %310 = vmatpush1.bf16.msra.mxu0 0
    %311 = vmatprep.subr.bf16.mxu0 0
    %312 = vmatpush1.bf16.msra.mxu0 0
    %313 = vmatprep.subr.bf16.mxu0 0
    %314 = vmatpush1.bf16.msra.mxu0 0
    %315 = vmatprep.subr.bf16.mxu0 0
    %316 = vmatpush1.bf16.msra.mxu0 0
    %317 = vmatprep.subr.bf16.mxu0 0
    %318 = vmatpush1.bf16.msra.mxu0 0
    %319 = vmatprep.subr.bf16.mxu0 0
    %320 = vmatpush1.bf16.msra.mxu0 0
    %321 = vmatprep.subr.bf16.mxu0 0
    %322 = vmatpush1.bf16.msra.mxu0 0
    %323 = vmatprep.subr.bf16.mxu0 0
    %324 = vmatpush1.bf16.msra.mxu0 0
    %325 = vmatprep.subr.bf16.mxu0 0
    %326 = vmatpush1.bf16.msra.mxu0 0
    %327 = vmatprep.subr.bf16.mxu0 0
    %328 = vmatpush1.bf16.msra.mxu0 0
    %329 = vmatprep.subr.bf16.mxu0 0
    %330 = vmatpush1.bf16.msra.mxu0 0
    %331 = vmatprep.subr.bf16.mxu0 0
    %332 = vmatpush1.bf16.msra.mxu0 0
    %333 = vmatprep.mubr.bf16.mxu0 0
    %334 = vmatmul.mubr.bf16.gmra.mrb[0].mxu0 %v299
    %v335 = vpop.f32.mrb[0].mxu0
    %v336 = vadd.f32 %v271, %v335
    %v337 = vpop.f32.mrb[0].mxu0
    %v338 = vpop.f32.mrb[0].mxu0
    %v339 = vpop.f32.mrb[0].mxu0
    %340 = vdwg.mxu0
    %v341 = vmax.f32 %v336, 0.0
    %v342 = vpack.c.bf16 %v341, %v341
    %v343 = vld [vmem:[%s7] sm:$0xf]
    %v344 = vld [vmem:[%s7 + $0x4] sm:$0xf]
    %v345 = vld [vmem:[%s7 + $0x8] sm:$0xf]
    %v346 = vld [vmem:[%s7 + $0xc] sm:$0xf]
    %v347 = vld [vmem:[%s8] sm:$0x1]
    %v349 = vlaneseq
    %v350 = vshrl.u32 %v349, 7
    %v351 = vsub.s32 0, %v350
    %v352 = vrot.slane %v347, %v351
    %v358 = vunpack.c.l.b16 %v343
    %v359 = vunpack.c.l.b16 %v344
    %v360 = vunpack.c.l.b16 %v345
    %v361 = vunpack.c.l.b16 %v346
    %v362 = vpack.c.b16 %v359, %v358
    %v363 = vpack.c.b16 %v361, %v360
    %vm366 = vcmask 261120
    %v368 = vsel %vm366, %v342, 0
    %370 = vmatprep.subr.bf16.mxu0 0
    %371 = vmatpush1.bf16.msra.mxu0 %v362
    %372 = vmatprep.subr.bf16.mxu0 0
    %373 = vmatpush1.bf16.msra.mxu0 %v363
    %374 = vmatprep.subr.bf16.mxu0 0
    %375 = vmatpush1.bf16.msra.mxu0 0
    %376 = vmatprep.subr.bf16.mxu0 0
    %377 = vmatpush1.bf16.msra.mxu0 0
    %378 = vmatprep.subr.bf16.mxu0 0
    %379 = vmatpush1.bf16.msra.mxu0 0
    %380 = vmatprep.subr.bf16.mxu0 0
    %381 = vmatpush1.bf16.msra.mxu0 0
    %382 = vmatprep.subr.bf16.mxu0 0
    %383 = vmatpush1.bf16.msra.mxu0 0
    %384 = vmatprep.subr.bf16.mxu0 0
    %385 = vmatpush1.bf16.msra.mxu0 0
    %386 = vmatprep.subr.bf16.mxu0 0
    %387 = vmatpush1.bf16.msra.mxu0 0
    %388 = vmatprep.subr.bf16.mxu0 0
    %389 = vmatpush1.bf16.msra.mxu0 0
    %390 = vmatprep.subr.bf16.mxu0 0
    %391 = vmatpush1.bf16.msra.mxu0 0
    %392 = vmatprep.subr.bf16.mxu0 0
    %393 = vmatpush1.bf16.msra.mxu0 0
    %394 = vmatprep.subr.bf16.mxu0 0
    %395 = vmatpush1.bf16.msra.mxu0 0
    %396 = vmatprep.subr.bf16.mxu0 0
    %397 = vmatpush1.bf16.msra.mxu0 0
    %398 = vmatprep.subr.bf16.mxu0 0
    %399 = vmatpush1.bf16.msra.mxu0 0
    %400 = vmatprep.subr.bf16.mxu0 0
    %401 = vmatpush1.bf16.msra.mxu0 0
    %402 = vmatprep.mubr.bf16.mxu0 0
    %403 = vmatmul.mubr.bf16.gmra.mrb[0].mxu0 %v368
    %v404 = vpop.f32.mrb[0].mxu0
    %v405 = vadd.f32 %v352, %v404
    %v406 = vpop.f32.mrb[0].mxu0
    %v407 = vpop.f32.mrb[0].mxu0
    %v408 = vpop.f32.mrb[0].mxu0
    %409 = vdwg.mxu0
    %vm410 = vcmask 64512
    %411 = vst.msk [vmem:[#allocation2] sm:$0xff] %vm410, %v405
    // Predicated region
    $region38: #{tpu_custom_call.1} parent=1 // pred_check
      _
    $region39: #{tpu_custom_call.1} parent=1 // pred_check_branch
      %413 = sbr.rel (0) target = $region41
    $region40: #{tpu_custom_call.1} parent=1 // pred_region
      %s415 = ssub.s32 128, 128
      %416 = vsyncadd [#allocation3], %s415
      %s418 = sshll.u32 [#allocation2], 4
      %s419 = int_to_ptr.vmem [resolvable:$true] %s418
      %421 = dma.vmem_to_hbm [thread:$0]  %s419, 128, %s9, [#allocation3]
    $region41: #{tpu_custom_call.1} parent=1 // pred_fallthru
      _
    // Predicated region
    $region42: #{tpu_custom_call.1} parent=1 // pred_check
      _
    $region43: #{tpu_custom_call.1} parent=1 // pred_check_branch
      %423 = sbr.rel (0) target = $region45
    $region44: #{tpu_custom_call.1} parent=1 // pred_region
      %424 = dma.done [#allocation3], 128
    $region45: #{tpu_custom_call.1} parent=1 // pred_fallthru
      _
    %425 = vsyncpa [#allocation3], 1

</llo_original>
